<compile_context>
chip_gen: v6e
topology: v6e:2x2x1
jax: 0.10.0
libtpu: 0.0.40
codegen_flags: <defaults>
</compile_context>

<pallas_src>
import functools
import math

import jax
import jax.numpy as jnp
from jax.experimental import pallas as pl
from jax.experimental.pallas import tpu as pltpu


def _round_up(a, b):
    return (a + b - 1) // b * b


def _vmem_limit_bytes(frac=0.75, cap=100 * 1024 * 1024):
    """Raise the scoped-VMEM limit above the conservative default, but stay well
    under the physical per-core capacity (64 MiB on v7x, 128 MiB on v5e/v6e)."""
    try:
        phys = int(pltpu.get_tpu_info().vmem_capacity_bytes)
    except Exception:
        phys = 64 * 1024 * 1024
    if phys <= 0:
        phys = 64 * 1024 * 1024
    return int(min(cap, phys * frac))


# ---------------------------------------------------------------------------
# Multi-head attention block (single head, per the module's view semantics)
# ---------------------------------------------------------------------------
def _mha_kernel(x_ref, mask_ref, wq_ref, wk_ref, wv_ref, wo_ref,
                gamma_ref, beta_ref, o_ref, attn_ref, *, eps, scale):
    x = x_ref[0]                                   # (S, H), native dtype
    xf = x.astype(jnp.float32)

    # QKV projections: operands stay in their native dtype, f32 accumulation.
    q = jnp.dot(x, wq_ref[...], preferred_element_type=jnp.float32)
    k = jnp.dot(x, wk_ref[...], preferred_element_type=jnp.float32)
    v = jnp.dot(x, wv_ref[...], preferred_element_type=jnp.float32)

    # scores (S, S) = q @ k^T / sqrt(H); masked_fill(mask == 0, -1e9)
    s = jax.lax.dot_general(q, k, (((1,), (1,)), ((), ())),
                            preferred_element_type=jnp.float32) * scale
    key_mask = mask_ref[0]                         # (1, S)
    s = jnp.where(key_mask == 0, jnp.float32(-1e9), s)

    # numerically stable softmax over keys
    s_max = jnp.max(s, axis=-1, keepdims=True)
    p = jnp.exp(s - s_max)
    attn = p / jnp.sum(p, axis=-1, keepdims=True)

    ctx = jnp.dot(attn, v, preferred_element_type=jnp.float32)        # (S, H)
    y = jnp.dot(ctx.astype(wo_ref.dtype), wo_ref[...],
                preferred_element_type=jnp.float32) + xf              # W_O + residual

    # LayerNorm (biased variance, eps=1e-6)
    mean = jnp.mean(y, axis=-1, keepdims=True)
    c = y - mean
    var = jnp.mean(c * c, axis=-1, keepdims=True)
    out = c * jax.lax.rsqrt(var + eps)
    out = out * gamma_ref[...].astype(jnp.float32) + beta_ref[...].astype(jnp.float32)

    o_ref[0] = out.astype(o_ref.dtype)
    attn_ref[0] = attn.astype(attn_ref.dtype)


def multi_head_attention(x, key_mask, wq, wk, wv, wo, gamma, beta, *, eps=1e-6):
    """x: [B,S,H]; key_mask: [B,1,S] (0 = masked key). Weights pre-transposed
    (y = x @ W). Returns (out [B,S,H], attn [B,S,S])."""
    B, S, H = x.shape
    scale = 1.0 / math.sqrt(H)
    gamma2 = gamma.reshape(1, H)
    beta2 = beta.reshape(1, H)

    out, attn = pl.pallas_call(
        functools.partial(_mha_kernel, eps=eps, scale=scale),
        out_shape=(jax.ShapeDtypeStruct((B, S, H), x.dtype),
                   jax.ShapeDtypeStruct((B, S, S), jnp.float32)),
        grid_spec=pltpu.PrefetchScalarGridSpec(
            num_scalar_prefetch=0,
            grid=(B,),
            in_specs=[
                pl.BlockSpec((1, S, H), lambda b: (b, 0, 0)),   # x
                pl.BlockSpec((1, 1, S), lambda b: (b, 0, 0)),   # key mask
                pl.BlockSpec((H, H), lambda b: (0, 0)),         # W_Q
                pl.BlockSpec((H, H), lambda b: (0, 0)),         # W_K
                pl.BlockSpec((H, H), lambda b: (0, 0)),         # W_V
                pl.BlockSpec((H, H), lambda b: (0, 0)),         # W_O
                pl.BlockSpec((1, H), lambda b: (0, 0)),         # gamma
                pl.BlockSpec((1, H), lambda b: (0, 0)),         # beta
            ],
            out_specs=[
                pl.BlockSpec((1, S, H), lambda b: (b, 0, 0)),
                pl.BlockSpec((1, S, S), lambda b: (b, 0, 0)),
            ],
        ),
        compiler_params=pltpu.CompilerParams(
            dimension_semantics=("parallel",),
            vmem_limit_bytes=_vmem_limit_bytes(),
        ),
    )(x, key_mask, wq, wk, wv, wo, gamma2, beta2)
    return out, attn


# ---------------------------------------------------------------------------
# Position-wise feed forward
# ---------------------------------------------------------------------------
def _ffn_kernel(x_ref, w1_ref, b1_ref, w2_ref, b2_ref, gamma_ref, beta_ref,
                o_ref, acc_ref, *, eps):
    k = pl.program_id(1)

    @pl.when(k == 0)
    def _():
        acc_ref[...] = jnp.zeros_like(acc_ref)

    # First matmul on this 4H slice: native-dtype operands, f32 accumulation.
    x = x_ref[...]                                               # (TM, H)
    h = jnp.dot(x, w1_ref[...], preferred_element_type=jnp.float32)
    h = h + b1_ref[...].astype(jnp.float32)
    h = jax.nn.gelu(h, approximate=False)                        # exact erf GELU, f32

    # Second matmul: cast GELU output back to the weight dtype for the MXU.
    acc_ref[...] += jnp.dot(h.astype(w2_ref.dtype), w2_ref[...],
                            preferred_element_type=jnp.float32)

    @pl.when(k == pl.num_programs(1) - 1)
    def _():
        y = acc_ref[...] + b2_ref[...].astype(jnp.float32) + x_ref[...].astype(jnp.float32)
        mean = jnp.mean(y, axis=-1, keepdims=True)
        c = y - mean
        var = jnp.mean(c * c, axis=-1, keepdims=True)
        out = c * jax.lax.rsqrt(var + eps)
        out = out * gamma_ref[...].astype(jnp.float32) + beta_ref[...].astype(jnp.float32)
        o_ref[...] = out.astype(o_ref.dtype)


def positionwise_feed_forward(x, w1, b1, w2, b2, gamma, beta, *, eps=1e-6,
                              row_tile=256, max_k_tile=512):
    """x: [B,S,H]. Params (pre-transposed): w1 [H,4H], b1 [4H], w2 [4H,H],
    b2/gamma/beta [H]."""
    B, S, H = x.shape
    H4 = w1.shape[1]
    n_rows = B * S

    # Row tile: largest requested tile the problem supports, multiple of 8 sublanes.
    row_tile = max(8, min(int(row_tile), _round_up(n_rows, 8)))
    row_tile = _round_up(row_tile, 8)
    n_rows_p = _round_up(n_rows, row_tile)          # pad ragged B*S instead of asserting

    # 4H tile: stream weight slices when 4H is large (bounds resident-weight VMEM).
    k_tile = min(H4, int(max_k_tile))
    while H4 % k_tile != 0:
        k_tile //= 2
    if k_tile != H4 and k_tile % 128 != 0:          # keep lane-aligned slices
        k_tile = H4
    nk = H4 // k_tile

    x2d = x.reshape(n_rows, H)
    if n_rows_p != n_rows:
        x2d = jnp.pad(x2d, ((0, n_rows_p - n_rows), (0, 0)))

    b1_2d = b1.reshape(1, H4)
    b2_2d = b2.reshape(1, H)
    gamma_2d = gamma.reshape(1, H)
    beta_2d = beta.reshape(1, H)

    out2d = pl.pallas_call(
        functools.partial(_ffn_kernel, eps=eps),
        out_shape=jax.ShapeDtypeStruct((n_rows_p, H), x.dtype),
        grid_spec=pltpu.PrefetchScalarGridSpec(
            num_scalar_prefetch=0,
            grid=(n_rows_p // row_tile, nk),
            in_specs=[
                pl.BlockSpec((row_tile, H), lambda i, k: (i, 0)),   # x tile (resident over k)
                pl.BlockSpec((H, k_tile), lambda i, k: (0, k)),     # W1 column slice
                pl.BlockSpec((1, k_tile), lambda i, k: (0, k)),     # b1 slice
                pl.BlockSpec((k_tile, H), lambda i, k: (k, 0)),     # W2 row slice
                pl.BlockSpec((1, H), lambda i, k: (0, 0)),          # b2
                pl.BlockSpec((1, H), lambda i, k: (0, 0)),          # gamma
                pl.BlockSpec((1, H), lambda i, k: (0, 0)),          # beta
            ],
            out_specs=pl.BlockSpec((row_tile, H), lambda i, k: (i, 0)),  # lane-dense (full H)
            scratch_shapes=[pltpu.VMEM((row_tile, H), jnp.float32)],
        ),
        compiler_params=pltpu.CompilerParams(
            dimension_semantics=("parallel", "arbitrary"),
            vmem_limit_bytes=_vmem_limit_bytes(),
        ),
    )(x2d, w1, b1_2d, w2, b2_2d, gamma_2d, beta_2d)

    if n_rows_p != n_rows:
        out2d = out2d[:n_rows]
    return out2d.reshape(B, S, H)


# ---------------------------------------------------------------------------
# Full BERT4Rec block
# ---------------------------------------------------------------------------
def bert4rec_block(x, mask, params, *, eps=1e-6, row_tile=256):
    """x: [B,S,H]; mask reshapeable to [B,S] (0 = do not attend to that key).
    Returns (output_enc [B,S,H], attn_dist [B,1,S,S])."""
    B, S, H = x.shape
    key_mask = mask.reshape(B, 1, S).astype(jnp.float32)

    attn_out, attn = multi_head_attention(
        x, key_mask, params["wq"], params["wk"], params["wv"], params["wo"],
        params["ln1_gamma"], params["ln1_beta"], eps=eps)

    out = positionwise_feed_forward(
        attn_out, params["w1"], params["b1"], params["w2"], params["b2"],
        params["ln2_gamma"], params["ln2_beta"], eps=eps, row_tile=row_tile)

    return out, attn.reshape(B, 1, S, S)


# ---------------------------------------------------------------------------
# Pure-JAX reference
# ---------------------------------------------------------------------------
def _layernorm_ref(y, gamma, beta, eps):
    mean = jnp.mean(y, axis=-1, keepdims=True)
    var = jnp.mean((y - mean) ** 2, axis=-1, keepdims=True)
    return (y - mean) * jax.lax.rsqrt(var + eps) * gamma + beta


def _reference_block(x, mask, p, eps=1e-6):
    B, S, H = x.shape
    xf = x.astype(jnp.float32)
    q = xf @ p["wq"]
    k = xf @ p["wk"]
    v = xf @ p["wv"]
    s = jnp.einsum("bqd,bkd->bqk", q, k) / math.sqrt(H)
    key_mask = mask.reshape(B, 1, S)
    s = jnp.where(key_mask == 0, -1e9, s)
    attn = jax.nn.softmax(s, axis=-1)
    ctx = jnp.einsum("bqk,bkd->bqd", attn, v)
    y = _layernorm_ref(ctx @ p["wo"] + xf, p["ln1_gamma"], p["ln1_beta"], eps)
    h = jax.nn.gelu(y @ p["w1"] + p["b1"], approximate=False)
    z = _layernorm_ref(h @ p["w2"] + p["b2"] + y, p["ln2_gamma"], p["ln2_beta"], eps)
    return z, attn[:, None]


if __name__ == "__main__":
    B, S, H = 2, 8, 32
    H4 = 4 * H

    key = jax.random.PRNGKey(0)
    keys = jax.random.split(key, 12)

    x = jax.random.normal(keys[0], (B, S, H), dtype=jnp.float32)

    # mask: [B, 1, 1, S], 0 marks positions not to attend to
    mask = jnp.ones((B, 1, 1, S), dtype=jnp.float32)
    mask = mask.at[0, 0, 0, S - 2:].set(0.0)

    params = {
        "wq": jax.random.normal(keys[1], (H, H), jnp.float32) / math.sqrt(H),
        "wk": jax.random.normal(keys[2], (H, H), jnp.float32) / math.sqrt(H),
        "wv": jax.random.normal(keys[3], (H, H), jnp.float32) / math.sqrt(H),
        "wo": jax.random.normal(keys[4], (H, H), jnp.float32) / math.sqrt(H),
        "ln1_gamma": 1.0 + 0.1 * jax.random.normal(keys[5], (H,), jnp.float32),
        "ln1_beta": 0.1 * jax.random.normal(keys[6], (H,), jnp.float32),
        "w1": jax.random.normal(keys[7], (H, H4), jnp.float32) / math.sqrt(H),
        "b1": 0.02 * jax.random.normal(keys[8], (H4,), jnp.float32),
        "w2": jax.random.normal(keys[9], (H4, H), jnp.float32) / math.sqrt(H4),
        "b2": 0.02 * jax.random.normal(keys[10], (H,), jnp.float32),
        "ln2_gamma": 1.0 + 0.1 * jax.random.normal(keys[11], (H,), jnp.float32),
        "ln2_beta": jnp.zeros((H,), jnp.float32),
    }

    out, attn_dist = bert4rec_block(x, mask, params)
    out = jax.block_until_ready(out)
    attn_dist = jax.block_until_ready(attn_dist)

    ref_out, ref_attn = _reference_block(x, mask, params)

    assert out.shape == (B, S, H), out.shape
    assert attn_dist.shape == (B, 1, S, S), attn_dist.shape
    assert jnp.allclose(attn_dist, ref_attn, atol=1e-4, rtol=1e-4), \
        f"attn max abs err {jnp.max(jnp.abs(attn_dist - ref_attn))}"
    assert jnp.allclose(out, ref_out, atol=1e-4, rtol=1e-4), \
        f"out max abs err {jnp.max(jnp.abs(out - ref_out))}"

    print("KERNEL_OK")
</pallas_src>

<mosaic_0001>
module attributes {stable_mosaic.version = 11 : i64} {
  func.func @_mha_kernel(%arg0: i32, %arg1: memref<1x8x32xf32, #tpu.memory_space<vmem>>, %arg2: memref<1x1x8xf32, #tpu.memory_space<vmem>>, %arg3: memref<32x32xf32, #tpu.memory_space<vmem>>, %arg4: memref<32x32xf32, #tpu.memory_space<vmem>>, %arg5: memref<32x32xf32, #tpu.memory_space<vmem>>, %arg6: memref<32x32xf32, #tpu.memory_space<vmem>>, %arg7: memref<1x32xf32, #tpu.memory_space<vmem>>, %arg8: memref<1x32xf32, #tpu.memory_space<vmem>>, %arg9: memref<1x8x32xf32, #tpu.memory_space<vmem>>, %arg10: memref<1x8x8xf32, #tpu.memory_space<vmem>>) attributes {dimension_semantics = [#tpu.dimension_semantics<parallel>], iteration_bounds = array<i64: 2>, scalar_prefetch = 0 : i64, scratch_operands = 0 : i64, tpu.core_type = #tpu.core_type<tc>, window_params = [{transform_indices = @transform_0, window_bounds = array<i64: 1, 8, 32>}, {transform_indices = @transform_1, window_bounds = array<i64: 1, 1, 8>}, {pipeline_mode = #tpu.pipeline_mode<synchronous>, transform_indices = @transform_2, window_bounds = array<i64: 32, 32>}, {pipeline_mode = #tpu.pipeline_mode<synchronous>, transform_indices = @transform_3, window_bounds = array<i64: 32, 32>}, {pipeline_mode = #tpu.pipeline_mode<synchronous>, transform_indices = @transform_4, window_bounds = array<i64: 32, 32>}, {pipeline_mode = #tpu.pipeline_mode<synchronous>, transform_indices = @transform_5, window_bounds = array<i64: 32, 32>}, {pipeline_mode = #tpu.pipeline_mode<synchronous>, transform_indices = @transform_6, window_bounds = array<i64: 1, 32>}, {pipeline_mode = #tpu.pipeline_mode<synchronous>, transform_indices = @transform_7, window_bounds = array<i64: 1, 32>}, {transform_indices = @transform_8, window_bounds = array<i64: 1, 8, 32>}, {transform_indices = @transform_9, window_bounds = array<i64: 1, 8, 8>}]} {
    %c0 = arith.constant 0 : index
    %c0_0 = arith.constant 0 : index
    %c0_1 = arith.constant 0 : index
    %0 = vector.load %arg1[%c0, %c0_0, %c0_1] : memref<1x8x32xf32, #tpu.memory_space<vmem>>, vector<1x8x32xf32>
    %1 = vector.shape_cast %0 : vector<1x8x32xf32> to vector<8x32xf32>
    %c0_2 = arith.constant 0 : index
    %c0_3 = arith.constant 0 : index
    %2 = vector.load %arg3[%c0_2, %c0_3] : memref<32x32xf32, #tpu.memory_space<vmem>>, vector<32x32xf32>
    %cst = arith.constant dense<0.000000e+00> : vector<8x32xf32>
    %3 = tpu.matmul %1, %2, %cst {dimension_numbers = #tpu.dot_dimension_numbers<[1], [0], [0], [1], [0, 0, 1, 1], [], []>} : vector<8x32xf32>, vector<32x32xf32>, vector<8x32xf32> -> vector<8x32xf32>
    %c0_4 = arith.constant 0 : index
    %c0_5 = arith.constant 0 : index
    %4 = vector.load %arg4[%c0_4, %c0_5] : memref<32x32xf32, #tpu.memory_space<vmem>>, vector<32x32xf32>
    %cst_6 = arith.constant dense<0.000000e+00> : vector<8x32xf32>
    %5 = tpu.matmul %1, %4, %cst_6 {dimension_numbers = #tpu.dot_dimension_numbers<[1], [0], [0], [1], [0, 0, 1, 1], [], []>} : vector<8x32xf32>, vector<32x32xf32>, vector<8x32xf32> -> vector<8x32xf32>
    %c0_7 = arith.constant 0 : index
    %c0_8 = arith.constant 0 : index
    %6 = vector.load %arg5[%c0_7, %c0_8] : memref<32x32xf32, #tpu.memory_space<vmem>>, vector<32x32xf32>
    %cst_9 = arith.constant dense<0.000000e+00> : vector<8x32xf32>
    %7 = tpu.matmul %1, %6, %cst_9 {dimension_numbers = #tpu.dot_dimension_numbers<[1], [0], [0], [1], [0, 0, 1, 1], [], []>} : vector<8x32xf32>, vector<32x32xf32>, vector<8x32xf32> -> vector<8x32xf32>
    %cst_10 = arith.constant dense<0.000000e+00> : vector<8x8xf32>
    %8 = tpu.matmul %3, %5, %cst_10 {dimension_numbers = #tpu.dot_dimension_numbers<[1], [1], [0], [0], [0, 0, 1, 0], [], []>} : vector<8x32xf32>, vector<8x32xf32>, vector<8x8xf32> -> vector<8x8xf32>
    %cst_11 = arith.constant 0.176776692 : f32
    %9 = vector.broadcast %cst_11 : f32 to vector<8x8xf32>
    %10 = arith.mulf %8, %9 : vector<8x8xf32>
    %c0_12 = arith.constant 0 : index
    %c0_13 = arith.constant 0 : index
    %c0_14 = arith.constant 0 : index
    %11 = vector.load %arg2[%c0_12, %c0_13, %c0_14] : memref<1x1x8xf32, #tpu.memory_space<vmem>>, vector<1x1x8xf32>
    %12 = vector.shape_cast %11 : vector<1x1x8xf32> to vector<1x8xf32>
    %cst_15 = arith.constant 0.000000e+00 : f32
    %13 = vector.broadcast %cst_15 : f32 to vector<1x8xf32>
    %14 = arith.cmpf oeq, %12, %13 : vector<1x8xf32>
    %cst_16 = arith.constant -1.000000e+09 : f32
    %15 = vector.shape_cast %14 : vector<1x8xi1> to vector<1x8xi1>
    %16 = vector.broadcast %15 : vector<1x8xi1> to vector<8x8xi1>
    %17 = vector.broadcast %cst_16 : f32 to vector<8x8xf32>
    %18 = arith.select %16, %17, %10 : vector<8x8xi1>, vector<8x8xf32>
    %cst_17 = arith.constant dense<0xFF800000> : vector<8xf32>
    %19 = vector.multi_reduction <maximumf>, %18, %cst_17 [1] : vector<8x8xf32> to vector<8xf32>
    %20 = vector.shape_cast %19 : vector<8xf32> to vector<8x1xf32>
    %21 = vector.broadcast %20 : vector<8x1xf32> to vector<8x8xf32>
    %22 = arith.subf %18, %21 : vector<8x8xf32>
    %23 = math.exp %22 : vector<8x8xf32>
    %cst_18 = arith.constant dense<0.000000e+00> : vector<8xf32>
    %24 = vector.multi_reduction <add>, %23, %cst_18 [1] : vector<8x8xf32> to vector<8xf32>
    %25 = vector.shape_cast %24 : vector<8xf32> to vector<8x1xf32>
    %26 = vector.broadcast %25 : vector<8x1xf32> to vector<8x8xf32>
    %27 = arith.divf %23, %26 : vector<8x8xf32>
    %cst_19 = arith.constant dense<0.000000e+00> : vector<8x32xf32>
    %28 = tpu.matmul %27, %7, %cst_19 {dimension_numbers = #tpu.dot_dimension_numbers<[1], [0], [0], [1], [0, 0, 1, 1], [], []>} : vector<8x8xf32>, vector<8x32xf32>, vector<8x32xf32> -> vector<8x32xf32>
    %c0_20 = arith.constant 0 : index
    %c0_21 = arith.constant 0 : index
    %29 = vector.load %arg6[%c0_20, %c0_21] : memref<32x32xf32, #tpu.memory_space<vmem>>, vector<32x32xf32>
    %cst_22 = arith.constant dense<0.000000e+00> : vector<8x32xf32>
    %30 = tpu.matmul %28, %29, %cst_22 {dimension_numbers = #tpu.dot_dimension_numbers<[1], [0], [0], [1], [0, 0, 1, 1], [], []>} : vector<8x32xf32>, vector<32x32xf32>, vector<8x32xf32> -> vector<8x32xf32>
    %31 = arith.addf %30, %1 : vector<8x32xf32>
    %cst_23 = arith.constant dense<0.000000e+00> : vector<8xf32>
    %32 = vector.multi_reduction <add>, %31, %cst_23 [1] : vector<8x32xf32> to vector<8xf32>
    %33 = vector.shape_cast %32 : vector<8xf32> to vector<8x1xf32>
    %cst_24 = arith.constant 3.200000e+01 : f32
    %34 = vector.broadcast %cst_24 : f32 to vector<8x1xf32>
    %35 = arith.divf %33, %34 : vector<8x1xf32>
    %36 = vector.broadcast %35 : vector<8x1xf32> to vector<8x32xf32>
    %37 = arith.subf %31, %36 : vector<8x32xf32>
    %38 = arith.mulf %37, %37 : vector<8x32xf32>
    %cst_25 = arith.constant dense<0.000000e+00> : vector<8xf32>
    %39 = vector.multi_reduction <add>, %38, %cst_25 [1] : vector<8x32xf32> to vector<8xf32>
    %40 = vector.shape_cast %39 : vector<8xf32> to vector<8x1xf32>
    %cst_26 = arith.constant 3.200000e+01 : f32
    %41 = vector.broadcast %cst_26 : f32 to vector<8x1xf32>
    %42 = arith.divf %40, %41 : vector<8x1xf32>
    %cst_27 = arith.constant 9.99999997E-7 : f32
    %43 = vector.broadcast %cst_27 : f32 to vector<8x1xf32>
    %44 = arith.addf %42, %43 : vector<8x1xf32>
    %45 = math.rsqrt %44 : vector<8x1xf32>
    %46 = vector.broadcast %45 : vector<8x1xf32> to vector<8x32xf32>
    %47 = arith.mulf %37, %46 : vector<8x32xf32>
    %c0_28 = arith.constant 0 : index
    %c0_29 = arith.constant 0 : index
    %48 = vector.load %arg7[%c0_28, %c0_29] : memref<1x32xf32, #tpu.memory_space<vmem>>, vector<1x32xf32>
    %49 = vector.broadcast %48 : vector<1x32xf32> to vector<8x32xf32>
    %50 = arith.mulf %47, %49 : vector<8x32xf32>
    %c0_30 = arith.constant 0 : index
    %c0_31 = arith.constant 0 : index
    %51 = vector.load %arg8[%c0_30, %c0_31] : memref<1x32xf32, #tpu.memory_space<vmem>>, vector<1x32xf32>
    %52 = vector.broadcast %51 : vector<1x32xf32> to vector<8x32xf32>
    %53 = arith.addf %50, %52 : vector<8x32xf32>
    %c0_32 = arith.constant 0 : index
    %c0_33 = arith.constant 0 : index
    %c0_34 = arith.constant 0 : index
    %54 = vector.load %arg9[%c0_32, %c0_33, %c0_34] : memref<1x8x32xf32, #tpu.memory_space<vmem>>, vector<1x8x32xf32>
    %55 = vector.shape_cast %54 : vector<1x8x32xf32> to vector<8x32xf32>
    %56 = vector.shape_cast %53 : vector<8x32xf32> to vector<1x8x32xf32>
    tpu.vector_store %arg9[%c0_32, %c0_33, %c0_34], %56 {strides = array<i32>} : memref<1x8x32xf32, #tpu.memory_space<vmem>>, vector<1x8x32xf32>,
    %c0_35 = arith.constant 0 : index
    %c0_36 = arith.constant 0 : index
    %c0_37 = arith.constant 0 : index
    %57 = vector.load %arg10[%c0_35, %c0_36, %c0_37] : memref<1x8x8xf32, #tpu.memory_space<vmem>>, vector<1x8x8xf32>
    %58 = vector.shape_cast %57 : vector<1x8x8xf32> to vector<8x8xf32>
    %59 = vector.shape_cast %27 : vector<8x8xf32> to vector<1x8x8xf32>
    tpu.vector_store %arg10[%c0_35, %c0_36, %c0_37], %59 {strides = array<i32>} : memref<1x8x8xf32, #tpu.memory_space<vmem>>, vector<1x8x8xf32>,
    return
  }
  func.func @transform_0(%arg0: i32) -> (i32, i32, i32) {
    %c0_i32 = arith.constant 0 : i32
    %c0_i32_0 = arith.constant 0 : i32
    %c0_i32_1 = arith.constant 0 : i32
    return %arg0, %c0_i32, %c0_i32_0 : i32, i32, i32
  }
  func.func @transform_1(%arg0: i32) -> (i32, i32, i32) {
    %c0_i32 = arith.constant 0 : i32
    %c0_i32_0 = arith.constant 0 : i32
    %c0_i32_1 = arith.constant 0 : i32
    return %arg0, %c0_i32, %c0_i32_0 : i32, i32, i32
  }
  func.func @transform_2(%arg0: i32) -> (i32, i32) {
    %c0_i32 = arith.constant 0 : i32
    %c0_i32_0 = arith.constant 0 : i32
    %c0_i32_1 = arith.constant 0 : i32
    return %c0_i32, %c0_i32_0 : i32, i32
  }
  func.func @transform_3(%arg0: i32) -> (i32, i32) {
    %c0_i32 = arith.constant 0 : i32
    %c0_i32_0 = arith.constant 0 : i32
    %c0_i32_1 = arith.constant 0 : i32
    return %c0_i32, %c0_i32_0 : i32, i32
  }
  func.func @transform_4(%arg0: i32) -> (i32, i32) {
    %c0_i32 = arith.constant 0 : i32
    %c0_i32_0 = arith.constant 0 : i32
    %c0_i32_1 = arith.constant 0 : i32
    return %c0_i32, %c0_i32_0 : i32, i32
  }
  func.func @transform_5(%arg0: i32) -> (i32, i32) {
    %c0_i32 = arith.constant 0 : i32
    %c0_i32_0 = arith.constant 0 : i32
    %c0_i32_1 = arith.constant 0 : i32
    return %c0_i32, %c0_i32_0 : i32, i32
  }
  func.func @transform_6(%arg0: i32) -> (i32, i32) {
    %c0_i32 = arith.constant 0 : i32
    %c0_i32_0 = arith.constant 0 : i32
    %c0_i32_1 = arith.constant 0 : i32
    return %c0_i32, %c0_i32_0 : i32, i32
  }
  func.func @transform_7(%arg0: i32) -> (i32, i32) {
    %c0_i32 = arith.constant 0 : i32
    %c0_i32_0 = arith.constant 0 : i32
    %c0_i32_1 = arith.constant 0 : i32
    return %c0_i32, %c0_i32_0 : i32, i32
  }
  func.func @transform_8(%arg0: i32) -> (i32, i32, i32) {
    %c0_i32 = arith.constant 0 : i32
    %c0_i32_0 = arith.constant 0 : i32
    %c0_i32_1 = arith.constant 0 : i32
    return %arg0, %c0_i32, %c0_i32_0 : i32, i32, i32
  }
  func.func @transform_9(%arg0: i32) -> (i32, i32, i32) {
    %c0_i32 = arith.constant 0 : i32
    %c0_i32_0 = arith.constant 0 : i32
    %c0_i32_1 = arith.constant 0 : i32
    return %arg0, %c0_i32, %c0_i32_0 : i32, i32, i32
  }
}

</mosaic_0001>

<llo_original>
// kernel: tpu_custom_call.1
$region0: #{tpu_custom_call.1}
  #allocation0 [shape = 'u32[]', space=smem, size = 0x4, offset = 0x4, fixed_abs, tag = 'smem constant byte address 0x4 - core index']
  #allocation1 [shape = 'u32[144,128]{1,0:T(1,128)}', space=vmem, size = 0x12000, scoped, tag = 'internal scratch']
  %s0 = inlined_call_operand.hbm [shape: f32[2,8,32], index: 0, kind: input, shape index: {}]
  %s1 = inlined_call_operand.hbm [shape: f32[2,1,8], index: 1, kind: input, shape index: {}]
  %s2 = inlined_call_operand.hbm [shape: f32[32,32], index: 2, kind: input, shape index: {}]
  %s3 = inlined_call_operand.hbm [shape: f32[32,32], index: 3, kind: input, shape index: {}]
  %s4 = inlined_call_operand.hbm [shape: f32[32,32], index: 4, kind: input, shape index: {}]
  %s5 = inlined_call_operand.hbm [shape: f32[32,32], index: 5, kind: input, shape index: {}]
  %s6 = inlined_call_operand.vmem [shape: f32[1,32], index: 6, kind: input, shape index: {}]
  %s7 = inlined_call_operand.vmem [shape: f32[1,32], index: 7, kind: input, shape index: {}]
  %s8 = inlined_call_operand.hbm [shape: f32[2,8,32], index: 8, kind: output, shape index: {0}]
  %s9 = inlined_call_operand.hbm [shape: f32[2,8,8], index: 9, kind: output, shape index: {1}]
  %10 = xla_tuple %s8, %s9
  %s11 = sld [smem:[#allocation0]]
  $region97: #{tpu_custom_call.1} parent=0
    _
  %s13 = ssub.s32 1, %s11
  %s14 = scalar_select 0, %s13, %s11
  $region1: #{tpu_custom_call.1} parent=0
    #allocation2 [shape = 'u8[8192]{0}', space=vmem, size = 0x2000, scoped, tag = 'input window, operand 0']
    #allocation3 [shape = 's32[2]{0}', space=sflag, size = 0x8, scoped, tag = 'scoped memory for tpu_custom_call.1']
    #allocation4 [shape = 's32[2]{0}', space=sflag, size = 0x8, scoped, tag = 'scoped memory for tpu_custom_call.1']
    #allocation5 [shape = 'u8[1024]{0}', space=vmem, size = 0x400, scoped, tag = 'input window, operand 1']
    #allocation6 [shape = 's32[2]{0}', space=sflag, size = 0x8, scoped, tag = 'scoped memory for tpu_custom_call.1']
    #allocation7 [shape = 'u8[16384]{0}', space=vmem, size = 0x4000, scoped, tag = 'input window, operand 2, single buffered']
    #allocation8 [shape = 'u8[16384]{0}', space=vmem, size = 0x4000, scoped, tag = 'input window, operand 3, single buffered']
    #allocation9 [shape = 's32[1]{0}', space=sflag, size = 0x4, scoped, tag = 'scoped memory for tpu_custom_call.1']
    #allocation10 [shape = 'u8[16384]{0}', space=vmem, size = 0x4000, scoped, tag = 'input window, operand 4, single buffered']
    #allocation11 [shape = 'u8[16384]{0}', space=vmem, size = 0x4000, scoped, tag = 'input window, operand 5, single buffered']
    #allocation12 [shape = 's32[1]{0}', space=sflag, size = 0x4, scoped, tag = 'scoped memory for tpu_custom_call.1']
    #allocation13 [shape = 'u8[8192]{0}', space=vmem, size = 0x2000, scoped, tag = 'output window, operand 0']
    #allocation14 [shape = 'u8[8192]{0}', space=vmem, size = 0x2000, scoped, tag = 'output window, operand 1']
    #allocation15 [shape = 's32[2]{0}', space=sflag, size = 0x8, scoped, tag = 'scoped memory for tpu_custom_call.1']
    %15 = vsyncpa [#allocation3], 0
    %s16 = scalar_lea.sflag [#allocation3], 1
    %17 = vsyncpa %s16, 0
    %18 = vsyncpa [#allocation6], 0
    %s19 = scalar_lea.sflag [#allocation6], 1
    %20 = vsyncpa %s19, 0
    %21 = vsyncpa [#allocation9], 0
    %22 = vsyncpa [#allocation12], 0
    %23 = vsyncpa [#allocation4], 0
    %s24 = scalar_lea.sflag [#allocation4], 1
    %25 = vsyncpa %s24, 0
    %26 = vsyncpa [#allocation15], 0
    %s27 = scalar_lea.sflag [#allocation15], 1
    %28 = vsyncpa %s27, 0
    loop: start=0, step=1, limit=4
    $region2: #{tpu_custom_call.1} parent=1 // loop_pre_header
      _
    $region3: #{tpu_custom_call.1} parent=1 // loop_header
      %s30 = sphi 0, %s34
      %p31 = scmp.ge.s32.totalorder %s30, 4
      %s40 = sphi 0, %s42
      %s43 = sphi 0, %s40
      %s44 = sphi 0, %s43
      %s60 = sphi 0, %s44
      %s66 = sphi 0, %s68
      %s69 = sphi 0, %s66
      %s70 = sphi 0, %s69
      %s86 = sphi 0, %s70
      %s90 = sphi 0, %s90
      %s92 = sphi 0, %s90
      %s93 = sphi 0, %s92
      %s107 = sphi 0, %s93
      %s111 = sphi 0, %s111
      %s113 = sphi 0, %s111
      %s114 = sphi 0, %s113
      %s128 = sphi 0, %s114
      %s132 = sphi 0, %s132
      %s134 = sphi 0, %s132
      %s135 = sphi 0, %s134
      %s149 = sphi 0, %s135
      %s153 = sphi 0, %s153
      %s155 = sphi 0, %s153
      %s156 = sphi 0, %s155
      %s170 = sphi 0, %s156
      %s174 = sphi 0, %s174
      %s176 = sphi 0, %s174
      %s177 = sphi 0, %s176
      %s191 = sphi 0, %s177
      %s195 = sphi 0, %s195
      %s197 = sphi 0, %s195
      %s198 = sphi 0, %s197
      %s212 = sphi 0, %s198
      %s218 = sphi 0, %s220
      %s221 = sphi 0, %s218
      %s222 = sphi 0, %s221
      %s238 = sphi 0, %s222
      %s244 = sphi 0, %s246
      %s247 = sphi 0, %s244
      %s248 = sphi 0, %s247
      %s264 = sphi 0, %s248
    $region4: #{tpu_custom_call.1} parent=1 // loop_header_branch
      %33 = sbr.rel (%p31) target = $region8
    $region5: #{tpu_custom_call.1} parent=1 // loop_body
      %s35 = ssub.s32 %s30, 1
      %s36 = ssub.s32 %s30, 2
      %s37 = sadd.s32 %s30, 1
      %s38 = ssub.s32 %s30, %s37
      %p39 = scmp.eq.s32.totalorder %s38, 0
      %s41 = sadd.s32 %s40, 1
      %s42 = scalar_select %p39, %s40, %s41
      %p45 = pneg %p39
      %p46 = scmp.eq.s32.totalorder %s30, 1
      %p47 = por %p45, %p46
      %p48 = scmp.ne.s32.totalorder %s40, %s43
      %p49 = scmp.eq.s32.totalorder %s30, 0
      %p50 = por %p48, %p49
      %p51 = scmp.ne.s32.totalorder %s40, %s43
      %p52 = scmp.eq.s32.totalorder %s35, 1
      %p53 = por %p51, %p52
      %p54 = scmp.ne.s32.totalorder %s43, %s44
      %p55 = scmp.eq.s32.totalorder %s35, 0
      %p56 = por %p54, %p55
      %p57 = scmp.ne.s32.totalorder %s43, %s44
      %p58 = scmp.eq.s32.totalorder %s36, 1
      %p59 = por %p57, %p58
      %p61 = scmp.ne.s32.totalorder %s44, %s60
      %p62 = scmp.eq.s32.totalorder %s36, 0
      %p63 = por %p61, %p62
      %s64 = ssub.s32 %s30, %s37
      %p65 = scmp.eq.s32.totalorder %s64, 0
      %s67 = sadd.s32 %s66, 1
      %s68 = scalar_select %p65, %s66, %s67
      %p71 = pneg %p65
      %p72 = scmp.eq.s32.totalorder %s30, 1
      %p73 = por %p71, %p72
      %p74 = scmp.ne.s32.totalorder %s66, %s69
      %p75 = scmp.eq.s32.totalorder %s30, 0
      %p76 = por %p74, %p75
      %p77 = scmp.ne.s32.totalorder %s66, %s69
      %p78 = scmp.eq.s32.totalorder %s35, 1
      %p79 = por %p77, %p78
      %p80 = scmp.ne.s32.totalorder %s69, %s70
      %p81 = scmp.eq.s32.totalorder %s35, 0
      %p82 = por %p80, %p81
      %p83 = scmp.ne.s32.totalorder %s69, %s70
      %p84 = scmp.eq.s32.totalorder %s36, 1
      %p85 = por %p83, %p84
      %p87 = scmp.ne.s32.totalorder %s70, %s86
      %p88 = scmp.eq.s32.totalorder %s36, 0
      %p89 = por %p87, %p88
      %s91 = sadd.s32 %s90, 1
      %p94 = scmp.eq.s32.totalorder %s30, 1
      %p95 = scmp.ne.s32.totalorder %s90, %s92
      %p96 = scmp.eq.s32.totalorder %s30, 0
      %p97 = por %p95, %p96
      %p98 = scmp.ne.s32.totalorder %s90, %s92
      %p99 = scmp.eq.s32.totalorder %s35, 1
      %p100 = por %p98, %p99
      %p101 = scmp.ne.s32.totalorder %s92, %s93
      %p102 = scmp.eq.s32.totalorder %s35, 0
      %p103 = por %p101, %p102
      %p104 = scmp.ne.s32.totalorder %s92, %s93
      %p105 = scmp.eq.s32.totalorder %s36, 1
      %p106 = por %p104, %p105
      %p108 = scmp.ne.s32.totalorder %s93, %s107
      %p109 = scmp.eq.s32.totalorder %s36, 0
      %p110 = por %p108, %p109
      %s112 = sadd.s32 %s111, 1
      %p115 = scmp.eq.s32.totalorder %s30, 1
      %p116 = scmp.ne.s32.totalorder %s111, %s113
      %p117 = scmp.eq.s32.totalorder %s30, 0
      %p118 = por %p116, %p117
      %p119 = scmp.ne.s32.totalorder %s111, %s113
      %p120 = scmp.eq.s32.totalorder %s35, 1
      %p121 = por %p119, %p120
      %p122 = scmp.ne.s32.totalorder %s113, %s114
      %p123 = scmp.eq.s32.totalorder %s35, 0
      %p124 = por %p122, %p123
      %p125 = scmp.ne.s32.totalorder %s113, %s114
      %p126 = scmp.eq.s32.totalorder %s36, 1
      %p127 = por %p125, %p126
      %p129 = scmp.ne.s32.totalorder %s114, %s128
      %p130 = scmp.eq.s32.totalorder %s36, 0
      %p131 = por %p129, %p130
      %s133 = sadd.s32 %s132, 1
      %p136 = scmp.eq.s32.totalorder %s30, 1
      %p137 = scmp.ne.s32.totalorder %s132, %s134
      %p138 = scmp.eq.s32.totalorder %s30, 0
      %p139 = por %p137, %p138
      %p140 = scmp.ne.s32.totalorder %s132, %s134
      %p141 = scmp.eq.s32.totalorder %s35, 1
      %p142 = por %p140, %p141
      %p143 = scmp.ne.s32.totalorder %s134, %s135
      %p144 = scmp.eq.s32.totalorder %s35, 0
      %p145 = por %p143, %p144
      %p146 = scmp.ne.s32.totalorder %s134, %s135
      %p147 = scmp.eq.s32.totalorder %s36, 1
      %p148 = por %p146, %p147
      %p150 = scmp.ne.s32.totalorder %s135, %s149
      %p151 = scmp.eq.s32.totalorder %s36, 0
      %p152 = por %p150, %p151
      %s154 = sadd.s32 %s153, 1
      %p157 = scmp.eq.s32.totalorder %s30, 1
      %p158 = scmp.ne.s32.totalorder %s153, %s155
      %p159 = scmp.eq.s32.totalorder %s30, 0
      %p160 = por %p158, %p159
      %p161 = scmp.ne.s32.totalorder %s153, %s155
      %p162 = scmp.eq.s32.totalorder %s35, 1
      %p163 = por %p161, %p162
      %p164 = scmp.ne.s32.totalorder %s155, %s156
      %p165 = scmp.eq.s32.totalorder %s35, 0
      %p166 = por %p164, %p165
      %p167 = scmp.ne.s32.totalorder %s155, %s156
      %p168 = scmp.eq.s32.totalorder %s36, 1
      %p169 = por %p167, %p168
      %p171 = scmp.ne.s32.totalorder %s156, %s170
      %p172 = scmp.eq.s32.totalorder %s36, 0
      %p173 = por %p171, %p172
      %s175 = sadd.s32 %s174, 1
      %p178 = scmp.eq.s32.totalorder %s30, 1
      %p179 = scmp.ne.s32.totalorder %s174, %s176
      %p180 = scmp.eq.s32.totalorder %s30, 0
      %p181 = por %p179, %p180
      %p182 = scmp.ne.s32.totalorder %s174, %s176
      %p183 = scmp.eq.s32.totalorder %s35, 1
      %p184 = por %p182, %p183
      %p185 = scmp.ne.s32.totalorder %s176, %s177
      %p186 = scmp.eq.s32.totalorder %s35, 0
      %p187 = por %p185, %p186
      %p188 = scmp.ne.s32.totalorder %s176, %s177
      %p189 = scmp.eq.s32.totalorder %s36, 1
      %p190 = por %p188, %p189
      %p192 = scmp.ne.s32.totalorder %s177, %s191
      %p193 = scmp.eq.s32.totalorder %s36, 0
      %p194 = por %p192, %p193
      %s196 = sadd.s32 %s195, 1
      %p199 = scmp.eq.s32.totalorder %s30, 1
      %p200 = scmp.ne.s32.totalorder %s195, %s197
      %p201 = scmp.eq.s32.totalorder %s30, 0
      %p202 = por %p200, %p201
      %p203 = scmp.ne.s32.totalorder %s195, %s197
      %p204 = scmp.eq.s32.totalorder %s35, 1
      %p205 = por %p203, %p204
      %p206 = scmp.ne.s32.totalorder %s197, %s198
      %p207 = scmp.eq.s32.totalorder %s35, 0
      %p208 = por %p206, %p207
      %p209 = scmp.ne.s32.totalorder %s197, %s198
      %p210 = scmp.eq.s32.totalorder %s36, 1
      %p211 = por %p209, %p210
      %p213 = scmp.ne.s32.totalorder %s198, %s212
      %p214 = scmp.eq.s32.totalorder %s36, 0
      %p215 = por %p213, %p214
      %s216 = ssub.s32 %s30, %s37
      %p217 = scmp.eq.s32.totalorder %s216, 0
      %s219 = sadd.s32 %s218, 1
      %s220 = scalar_select %p217, %s218, %s219
      %p223 = pneg %p217
      %p224 = scmp.eq.s32.totalorder %s30, 1
      %p225 = por %p223, %p224
      %p226 = scmp.ne.s32.totalorder %s218, %s221
      %p227 = scmp.eq.s32.totalorder %s30, 0
      %p228 = por %p226, %p227
      %p229 = scmp.ne.s32.totalorder %s218, %s221
      %p230 = scmp.eq.s32.totalorder %s35, 1
      %p231 = por %p229, %p230
      %p232 = scmp.ne.s32.totalorder %s221, %s222
      %p233 = scmp.eq.s32.totalorder %s35, 0
      %p234 = por %p232, %p233
      %p235 = scmp.ne.s32.totalorder %s221, %s222
      %p236 = scmp.eq.s32.totalorder %s36, 1
      %p237 = por %p235, %p236
      %p239 = scmp.ne.s32.totalorder %s222, %s238
      %p240 = scmp.eq.s32.totalorder %s36, 0
      %p241 = por %p239, %p240
      %s242 = ssub.s32 %s30, %s37
      %p243 = scmp.eq.s32.totalorder %s242, 0
      %s245 = sadd.s32 %s244, 1
      %s246 = scalar_select %p243, %s244, %s245
      %p249 = pneg %p243
      %p250 = scmp.eq.s32.totalorder %s30, 1
      %p251 = por %p249, %p250
      %p252 = scmp.ne.s32.totalorder %s244, %s247
      %p253 = scmp.eq.s32.totalorder %s30, 0
      %p254 = por %p252, %p253
      %p255 = scmp.ne.s32.totalorder %s244, %s247
      %p256 = scmp.eq.s32.totalorder %s35, 1
      %p257 = por %p255, %p256
      %p258 = scmp.ne.s32.totalorder %s247, %s248
      %p259 = scmp.eq.s32.totalorder %s35, 0
      %p260 = por %p258, %p259
      %p261 = scmp.ne.s32.totalorder %s247, %s248
      %p262 = scmp.eq.s32.totalorder %s36, 1
      %p263 = por %p261, %p262
      %p265 = scmp.ne.s32.totalorder %s248, %s264
      %p266 = scmp.eq.s32.totalorder %s36, 0
      %p267 = por %p265, %p266
      %p268 = scmp.le.s32.totalorder 1, %s30
      %p269 = scmp.lt.s32.totalorder %s30, 3
      %p270 = pnand %p268, %p269
      %p271 = pneg %p270
      // Predicated region
      $region9: #{tpu_custom_call.1} parent=5 // pred_check
        _
      $region10: #{tpu_custom_call.1} parent=5 // pred_check_branch
        %273 = sbr.rel (%p270) target = $region12
      $region11: #{tpu_custom_call.1} parent=5 // pred_region
        %s274 = ssub.s32 %s30, 1
        // Predicated region
        $region13: #{tpu_custom_call.1} parent=11 // pred_check
          %p275 = pneg %p103
        $region14: #{tpu_custom_call.1} parent=11 // pred_check_branch
          %277 = sbr.rel (%p275) target = $region16
        $region15: #{tpu_custom_call.1} parent=11 // pred_region
          %s279 = ssub.s32 512, 512
          %280 = vsyncadd [#allocation6], %s279
          %s281 = sshll.u32 [#allocation7], 4
          %s282 = int_to_ptr.vmem [resolvable:$true] %s281
          %287 = dma.hbm_to_vmem [thread:$0]  %s2, 512, %s282, [#allocation6], 128, 128, 8
        $region16: #{tpu_custom_call.1} parent=11 // pred_fallthru
          _
        // Predicated region
        $region17: #{tpu_custom_call.1} parent=11 // pred_check
          %p288 = pneg %p124
        $region18: #{tpu_custom_call.1} parent=11 // pred_check_branch
          %290 = sbr.rel (%p288) target = $region20
        $region19: #{tpu_custom_call.1} parent=11 // pred_region
          %s292 = ssub.s32 512, 512
          %293 = vsyncadd [#allocation9], %s292
          %s294 = sshll.u32 [#allocation8], 4
          %s295 = int_to_ptr.vmem [resolvable:$true] %s294
          %300 = dma.hbm_to_vmem [thread:$0]  %s3, 512, %s295, [#allocation9], 128, 128, 8
        $region20: #{tpu_custom_call.1} parent=11 // pred_fallthru
          _
        // Predicated region
        $region21: #{tpu_custom_call.1} parent=11 // pred_check
          %p301 = pneg %p145
        $region22: #{tpu_custom_call.1} parent=11 // pred_check_branch
          %303 = sbr.rel (%p301) target = $region24
        $region23: #{tpu_custom_call.1} parent=11 // pred_region
          %s305 = ssub.s32 512, 512
          %306 = vsyncadd [#allocation9], %s305
          %s307 = sshll.u32 [#allocation10], 4
          %s308 = int_to_ptr.vmem [resolvable:$true] %s307
          %313 = dma.hbm_to_vmem [thread:$0]  %s4, 512, %s308, [#allocation9], 128, 128, 8
        $region24: #{tpu_custom_call.1} parent=11 // pred_fallthru
          _
        // Predicated region
        $region25: #{tpu_custom_call.1} parent=11 // pred_check
          %p314 = pneg %p166
        $region26: #{tpu_custom_call.1} parent=11 // pred_check_branch
          %316 = sbr.rel (%p314) target = $region28
        $region27: #{tpu_custom_call.1} parent=11 // pred_region
          %s318 = ssub.s32 512, 512
          %319 = vsyncadd [#allocation12], %s318
          %s320 = sshll.u32 [#allocation11], 4
          %s321 = int_to_ptr.vmem [resolvable:$true] %s320
          %326 = dma.hbm_to_vmem [thread:$0]  %s5, 512, %s321, [#allocation12], 128, 128, 8
        $region28: #{tpu_custom_call.1} parent=11 // pred_fallthru
          _
        // Predicated region
        $region29: #{tpu_custom_call.1} parent=11 // pred_check
          %p327 = pneg %p187
        $region30: #{tpu_custom_call.1} parent=11 // pred_check_branch
          %329 = sbr.rel (%p327) target = $region32
        $region31: #{tpu_custom_call.1} parent=11 // pred_region
          _
        $region32: #{tpu_custom_call.1} parent=11 // pred_fallthru
          _
        // Predicated region
        $region33: #{tpu_custom_call.1} parent=11 // pred_check
          %p330 = pneg %p208
        $region34: #{tpu_custom_call.1} parent=11 // pred_check_branch
          %332 = sbr.rel (%p330) target = $region36
        $region35: #{tpu_custom_call.1} parent=11 // pred_region
          _
        $region36: #{tpu_custom_call.1} parent=11 // pred_fallthru
          _
      $region12: #{tpu_custom_call.1} parent=5 // pred_fallthru
        _
      %p333 = scmp.lt.s32.totalorder %s30, 2
      // Predicated region
      $region37: #{tpu_custom_call.1} parent=5 // pred_check
        %p334 = pneg %p333
      $region38: #{tpu_custom_call.1} parent=5 // pred_check_branch
        %336 = sbr.rel (%p334) target = $region40
      $region39: #{tpu_custom_call.1} parent=5 // pred_region
        // Predicated region
        $region41: #{tpu_custom_call.1} parent=39 // pred_check
          %p337 = pneg %p50
        $region42: #{tpu_custom_call.1} parent=39 // pred_check_branch
          %339 = sbr.rel (%p337) target = $region44
        $region43: #{tpu_custom_call.1} parent=39 // pred_region
          %s340 = sand.u32 %s40, 1
          %s341 = scalar_lea.sflag [#allocation3], %s340
          %s342 = sand.u32 %s40, 1
          %s343 = smul.addr %s342, 8
          %s344 = scalar_lea.vmem [#allocation2], %s343
          %s346 = ssub.s32 128, 128
          %347 = vsyncadd %s341, %s346
          %s348 = smul.addr %s30, 128
          %s349 = scalar_lea.hbm %s0, %s348
          %s351 = sshll.u32 %s344, 4
          %s352 = int_to_ptr.vmem [resolvable:$true] %s351
          %354 = dma.hbm_to_vmem [thread:$0]  %s349, 128, %s352, %s341
        $region44: #{tpu_custom_call.1} parent=39 // pred_fallthru
          _
        // Predicated region
        $region45: #{tpu_custom_call.1} parent=39 // pred_check
          %p355 = pneg %p76
        $region46: #{tpu_custom_call.1} parent=39 // pred_check_branch
          %357 = sbr.rel (%p355) target = $region48
        $region47: #{tpu_custom_call.1} parent=39 // pred_region
          %s358 = sand.u32 %s30, 1
          %s359 = scalar_lea.sflag [#allocation6], %s358
          %s360 = sand.u32 %s66, 1
          %s361 = scalar_lea.vmem [#allocation5], %s360
          %s363 = ssub.s32 16, 16
          %364 = vsyncadd %s359, %s363
          %s365 = smul.addr %s30, 16
          %s366 = scalar_lea.hbm %s1, %s365
          %s368 = sshll.u32 %s361, 4
          %s369 = int_to_ptr.vmem [resolvable:$true] %s368
          %371 = dma.hbm_to_vmem [thread:$0]  %s366, 16, %s369, %s359
        $region48: #{tpu_custom_call.1} parent=39 // pred_fallthru
          _
      $region40: #{tpu_custom_call.1} parent=5 // pred_fallthru
        _
      %p372 = scmp.le.s32.totalorder 1, %s30
      %p373 = scmp.lt.s32.totalorder %s30, 3
      %p374 = pnand %p372, %p373
      %p375 = pneg %p374
      // Predicated region
      $region49: #{tpu_custom_call.1} parent=5 // pred_check
        _
      $region50: #{tpu_custom_call.1} parent=5 // pred_check_branch
        %377 = sbr.rel (%p374) target = $region52
      $region51: #{tpu_custom_call.1} parent=5 // pred_region
        %s378 = ssub.s32 %s30, 1
        %s379 = sand.u32 %s43, 1
        %s380 = scalar_lea.sflag [#allocation3], %s379
        %s381 = sand.u32 %s43, 1
        %s382 = smul.addr %s381, 8
        %s383 = scalar_lea.vmem [#allocation2], %s382
        // Predicated region
        $region53: #{tpu_custom_call.1} parent=51 // pred_check
          %p384 = pneg %p56
        $region54: #{tpu_custom_call.1} parent=51 // pred_check_branch
          %386 = sbr.rel (%p384) target = $region56
        $region55: #{tpu_custom_call.1} parent=51 // pred_region
          %387 = dma.done %s380, 128
        $region56: #{tpu_custom_call.1} parent=51 // pred_fallthru
          _
        %s388 = sand.u32 %s35, 1
        %s389 = scalar_lea.sflag [#allocation6], %s388
        %s390 = sand.u32 %s69, 1
        %s391 = scalar_lea.vmem [#allocation5], %s390
        // Predicated region
        $region57: #{tpu_custom_call.1} parent=51 // pred_check
          %p392 = pneg %p82
        $region58: #{tpu_custom_call.1} parent=51 // pred_check_branch
          %394 = sbr.rel (%p392) target = $region60
        $region59: #{tpu_custom_call.1} parent=51 // pred_region
          %395 = dma.done %s389, 16
        $region60: #{tpu_custom_call.1} parent=51 // pred_fallthru
          _
        // Predicated region
        $region61: #{tpu_custom_call.1} parent=51 // pred_check
          %p396 = pneg %p103
        $region62: #{tpu_custom_call.1} parent=51 // pred_check_branch
          %398 = sbr.rel (%p396) target = $region64
        $region63: #{tpu_custom_call.1} parent=51 // pred_region
          %399 = dma.done [#allocation6], 512
        $region64: #{tpu_custom_call.1} parent=51 // pred_fallthru
          _
        // Predicated region
        $region65: #{tpu_custom_call.1} parent=51 // pred_check
          %p400 = pneg %p124
        $region66: #{tpu_custom_call.1} parent=51 // pred_check_branch
          %402 = sbr.rel (%p400) target = $region68
        $region67: #{tpu_custom_call.1} parent=51 // pred_region
          %403 = dma.done [#allocation9], 512
        $region68: #{tpu_custom_call.1} parent=51 // pred_fallthru
          _
        // Predicated region
        $region69: #{tpu_custom_call.1} parent=51 // pred_check
          %p404 = pneg %p145
        $region70: #{tpu_custom_call.1} parent=51 // pred_check_branch
          %406 = sbr.rel (%p404) target = $region72
        $region71: #{tpu_custom_call.1} parent=51 // pred_region
          %407 = dma.done [#allocation9], 512
        $region72: #{tpu_custom_call.1} parent=51 // pred_fallthru
          _
        // Predicated region
        $region73: #{tpu_custom_call.1} parent=51 // pred_check
          %p408 = pneg %p166
        $region74: #{tpu_custom_call.1} parent=51 // pred_check_branch
          %410 = sbr.rel (%p408) target = $region76
        $region75: #{tpu_custom_call.1} parent=51 // pred_region
          %411 = dma.done [#allocation12], 512
        $region76: #{tpu_custom_call.1} parent=51 // pred_fallthru
          _
        %s412 = sand.u32 %s43, 1
        %s413 = scalar_lea.sflag [#allocation3], %s412
        %s414 = sand.u32 %s43, 1
        %s415 = smul.addr %s414, 8
        %s416 = scalar_lea.vmem [#allocation2], %s415
        %p417 = pneg %p56
        %p418 = pneg %p53
        %s419 = sand.u32 %s35, 1
        %s420 = scalar_lea.sflag [#allocation6], %s419
        %s421 = sand.u32 %s69, 1
        %s422 = scalar_lea.vmem [#allocation5], %s421
        %p423 = pneg %p82
        %p424 = pneg %p79
        %p425 = pneg %p103
        %p426 = pneg %p100
        %p427 = pneg %p124
        %p428 = pneg %p121
        %p429 = pneg %p145
        %p430 = pneg %p142
        %p431 = pneg %p166
        %p432 = pneg %p163
        %p433 = pneg %p187
        %p434 = pneg %p184
        %p435 = pneg %p208
        %p436 = pneg %p205
        %p437 = pneg %p234
        %p438 = pneg %p231
        %s439 = sand.u32 %s221, 1
        %s440 = scalar_lea.sflag [#allocation4], %s439
        %s441 = sand.u32 %s221, 1
        %s442 = smul.addr %s441, 8
        %s443 = scalar_lea.vmem [#allocation13], %s442
        %p444 = pneg %p260
        %p445 = pneg %p257
        %s446 = sand.u32 %s247, 1
        %s447 = scalar_lea.sflag [#allocation15], %s446
        %s448 = sand.u32 %s247, 1
        %s449 = smul.addr %s448, 8
        %s450 = scalar_lea.vmem [#allocation14], %s449
        %v451 = vld [vmem:[%s383] sm:$0xff]
        %v452 = vld [vmem:[#allocation7] sm:$0xff]
        %v453 = vld [vmem:[#allocation7 + $0x8] sm:$0xff]
        %v454 = vld [vmem:[#allocation7 + $0x10] sm:$0xff]
        %v455 = vld [vmem:[#allocation7 + $0x18] sm:$0xff]
        %vm456 = vcmask 261120
        %v458 = vsel %vm456, %v451, 0
        %460 = vmatprep.subr.mxu0 0.0
        %461 = vmatpush1.msra.mxu0 0.0
        %462 = vmatprep.subr.mxu0 0.0
        %463 = vmatpush1.msra.mxu0 0.0
        %464 = vmatprep.subr.mxu0 0.0
        %465 = vmatpush1.msra.mxu0 0.0
        %466 = vmatprep.subr.mxu0 0.0
        %467 = vmatpush1.msra.mxu0 0.0
        %468 = vmatprep.subr.mxu0 0.0
        %469 = vmatpush1.msra.mxu0 0.0
        %470 = vmatprep.subr.mxu0 0.0
        %471 = vmatpush1.msra.mxu0 0.0
        %472 = vmatprep.subr.mxu0 0.0
        %473 = vmatpush1.msra.mxu0 0.0
        %474 = vmatprep.subr.mxu0 0.0
        %475 = vmatpush1.msra.mxu0 0.0
        %476 = vmatprep.subr.mxu0 0.0
        %477 = vmatpush1.msra.mxu0 0.0
        %478 = vmatprep.subr.mxu0 0.0
        %479 = vmatpush1.msra.mxu0 0.0
        %480 = vmatprep.subr.mxu0 0.0
        %481 = vmatpush1.msra.mxu0 0.0
        %482 = vmatprep.subr.mxu0 0.0
        %483 = vmatpush1.msra.mxu0 0.0
        %484 = vmatprep.subr.mxu0 0.0
        %485 = vmatpush1.msra.mxu0 %v455
        %486 = vmatprep.subr.mxu0 0.0
        %487 = vmatpush1.msra.mxu0 %v454
        %488 = vmatprep.subr.mxu0 0.0
        %489 = vmatpush1.msra.mxu0 %v453
        %490 = vmatprep.subr.mxu0 0.0
        %491 = vmatpush1.msra.mxu0 %v452
        %492 = vmatprep.subr.mxu0 0.0
        %493 = vmatpush2.msra.mxu0 0.0
        %494 = vmatprep.subr.mxu0 0.0
        %495 = vmatpush2.msra.mxu0 0.0
        %496 = vmatprep.subr.mxu0 0.0
        %497 = vmatpush2.msra.mxu0 0.0
        %498 = vmatprep.subr.mxu0 0.0
        %499 = vmatpush2.msra.mxu0 0.0
        %500 = vmatprep.subr.mxu0 0.0
        %501 = vmatpush2.msra.mxu0 0.0
        %502 = vmatprep.subr.mxu0 0.0
        %503 = vmatpush2.msra.mxu0 0.0
        %504 = vmatprep.subr.mxu0 0.0
        %505 = vmatpush2.msra.mxu0 0.0
        %506 = vmatprep.subr.mxu0 0.0
        %507 = vmatpush2.msra.mxu0 0.0
        %508 = vmatprep.subr.mxu0 0.0
        %509 = vmatpush2.msra.mxu0 0.0
        %510 = vmatprep.subr.mxu0 0.0
        %511 = vmatpush2.msra.mxu0 0.0
        %512 = vmatprep.subr.mxu0 0.0
        %513 = vmatpush2.msra.mxu0 0.0
        %514 = vmatprep.subr.mxu0 0.0
        %515 = vmatpush2.msra.mxu0 0.0
        %516 = vmatprep.subr.mxu0 0.0
        %517 = vmatpush2.msra.mxu0 0.0
        %518 = vmatprep.subr.mxu0 0.0
        %519 = vmatpush2.msra.mxu0 0.0
        %520 = vmatprep.subr.mxu0 0.0
        %521 = vmatpush2.msra.mxu0 0.0
        %522 = vmatprep.subr.mxu0 0.0
        %523 = vmatpush2.msra.mxu0 0.0
        %524 = vmatprep.mubr.f32.mxu0 0.0
        %525 = vmatmul.mubr.f32.gmra.mxu0 %v458
        %v526 = vpop.f32.mrf.mxu0
        %v527 = vadd.f32 0.0, %v526
        %v528 = vpop.f32.mrf.mxu0
        %529 = vdwg.mxu0
        %v530 = vld [vmem:[#allocation8] sm:$0xff]
        %v531 = vld [vmem:[#allocation8 + $0x8] sm:$0xff]
        %v532 = vld [vmem:[#allocation8 + $0x10] sm:$0xff]
        %v533 = vld [vmem:[#allocation8 + $0x18] sm:$0xff]
        %534 = vmatprep.subr.mxu0 0.0
        %535 = vmatpush1.msra.mxu0 0.0
        %536 = vmatprep.subr.mxu0 0.0
        %537 = vmatpush1.msra.mxu0 0.0
        %538 = vmatprep.subr.mxu0 0.0
        %539 = vmatpush1.msra.mxu0 0.0
        %540 = vmatprep.subr.mxu0 0.0
        %541 = vmatpush1.msra.mxu0 0.0
        %542 = vmatprep.subr.mxu0 0.0
        %543 = vmatpush1.msra.mxu0 0.0
        %544 = vmatprep.subr.mxu0 0.0
        %545 = vmatpush1.msra.mxu0 0.0
        %546 = vmatprep.subr.mxu0 0.0
        %547 = vmatpush1.msra.mxu0 0.0
        %548 = vmatprep.subr.mxu0 0.0
        %549 = vmatpush1.msra.mxu0 0.0
        %550 = vmatprep.subr.mxu0 0.0
        %551 = vmatpush1.msra.mxu0 0.0
        %552 = vmatprep.subr.mxu0 0.0
        %553 = vmatpush1.msra.mxu0 0.0
        %554 = vmatprep.subr.mxu0 0.0
        %555 = vmatpush1.msra.mxu0 0.0
        %556 = vmatprep.subr.mxu0 0.0
        %557 = vmatpush1.msra.mxu0 0.0
        %558 = vmatprep.subr.mxu0 0.0
        %559 = vmatpush1.msra.mxu0 %v533
        %560 = vmatprep.subr.mxu0 0.0
        %561 = vmatpush1.msra.mxu0 %v532
        %562 = vmatprep.subr.mxu0 0.0
        %563 = vmatpush1.msra.mxu0 %v531
        %564 = vmatprep.subr.mxu0 0.0
        %565 = vmatpush1.msra.mxu0 %v530
        %566 = vmatprep.subr.mxu0 0.0
        %567 = vmatpush2.msra.mxu0 0.0
        %568 = vmatprep.subr.mxu0 0.0
        %569 = vmatpush2.msra.mxu0 0.0
        %570 = vmatprep.subr.mxu0 0.0
        %571 = vmatpush2.msra.mxu0 0.0
        %572 = vmatprep.subr.mxu0 0.0
        %573 = vmatpush2.msra.mxu0 0.0
        %574 = vmatprep.subr.mxu0 0.0
        %575 = vmatpush2.msra.mxu0 0.0
        %576 = vmatprep.subr.mxu0 0.0
        %577 = vmatpush2.msra.mxu0 0.0
        %578 = vmatprep.subr.mxu0 0.0
        %579 = vmatpush2.msra.mxu0 0.0
        %580 = vmatprep.subr.mxu0 0.0
        %581 = vmatpush2.msra.mxu0 0.0
        %582 = vmatprep.subr.mxu0 0.0
        %583 = vmatpush2.msra.mxu0 0.0
        %584 = vmatprep.subr.mxu0 0.0
        %585 = vmatpush2.msra.mxu0 0.0
        %586 = vmatprep.subr.mxu0 0.0
        %587 = vmatpush2.msra.mxu0 0.0
        %588 = vmatprep.subr.mxu0 0.0
        %589 = vmatpush2.msra.mxu0 0.0
        %590 = vmatprep.subr.mxu0 0.0
        %591 = vmatpush2.msra.mxu0 0.0
        %592 = vmatprep.subr.mxu0 0.0
        %593 = vmatpush2.msra.mxu0 0.0
        %594 = vmatprep.subr.mxu0 0.0
        %595 = vmatpush2.msra.mxu0 0.0
        %596 = vmatprep.subr.mxu0 0.0
        %597 = vmatpush2.msra.mxu0 0.0
        %598 = vmatprep.mubr.f32.mxu0 0.0
        %599 = vmatmul.mubr.f32.gmra.mxu0 %v458
        %v600 = vpop.f32.mrf.mxu0
        %v601 = vadd.f32 0.0, %v600
        %v602 = vpop.f32.mrf.mxu0
        %603 = vdwg.mxu0
        %v604 = vld [vmem:[#allocation10] sm:$0xff]
        %v605 = vld [vmem:[#allocation10 + $0x8] sm:$0xff]
        %v606 = vld [vmem:[#allocation10 + $0x10] sm:$0xff]
        %v607 = vld [vmem:[#allocation10 + $0x18] sm:$0xff]
        %608 = vmatprep.subr.mxu0 0.0
        %609 = vmatpush1.msra.mxu0 0.0
        %610 = vmatprep.subr.mxu0 0.0
        %611 = vmatpush1.msra.mxu0 0.0
        %612 = vmatprep.subr.mxu0 0.0
        %613 = vmatpush1.msra.mxu0 0.0
        %614 = vmatprep.subr.mxu0 0.0
        %615 = vmatpush1.msra.mxu0 0.0
        %616 = vmatprep.subr.mxu0 0.0
        %617 = vmatpush1.msra.mxu0 0.0
        %618 = vmatprep.subr.mxu0 0.0
        %619 = vmatpush1.msra.mxu0 0.0
        %620 = vmatprep.subr.mxu0 0.0
        %621 = vmatpush1.msra.mxu0 0.0
        %622 = vmatprep.subr.mxu0 0.0
        %623 = vmatpush1.msra.mxu0 0.0
        %624 = vmatprep.subr.mxu0 0.0
        %625 = vmatpush1.msra.mxu0 0.0
        %626 = vmatprep.subr.mxu0 0.0
        %627 = vmatpush1.msra.mxu0 0.0
        %628 = vmatprep.subr.mxu0 0.0
        %629 = vmatpush1.msra.mxu0 0.0
        %630 = vmatprep.subr.mxu0 0.0
        %631 = vmatpush1.msra.mxu0 0.0
        %632 = vmatprep.subr.mxu0 0.0
        %633 = vmatpush1.msra.mxu0 %v607
        %634 = vmatprep.subr.mxu0 0.0
        %635 = vmatpush1.msra.mxu0 %v606
        %636 = vmatprep.subr.mxu0 0.0
        %637 = vmatpush1.msra.mxu0 %v605
        %638 = vmatprep.subr.mxu0 0.0
        %639 = vmatpush1.msra.mxu0 %v604
        %640 = vmatprep.subr.mxu0 0.0
        %641 = vmatpush2.msra.mxu0 0.0
        %642 = vmatprep.subr.mxu0 0.0
        %643 = vmatpush2.msra.mxu0 0.0
        %644 = vmatprep.subr.mxu0 0.0
        %645 = vmatpush2.msra.mxu0 0.0
        %646 = vmatprep.subr.mxu0 0.0
        %647 = vmatpush2.msra.mxu0 0.0
        %648 = vmatprep.subr.mxu0 0.0
        %649 = vmatpush2.msra.mxu0 0.0
        %650 = vmatprep.subr.mxu0 0.0
        %651 = vmatpush2.msra.mxu0 0.0
        %652 = vmatprep.subr.mxu0 0.0
        %653 = vmatpush2.msra.mxu0 0.0
        %654 = vmatprep.subr.mxu0 0.0
        %655 = vmatpush2.msra.mxu0 0.0
        %656 = vmatprep.subr.mxu0 0.0
        %657 = vmatpush2.msra.mxu0 0.0
        %658 = vmatprep.subr.mxu0 0.0
        %659 = vmatpush2.msra.mxu0 0.0
        %660 = vmatprep.subr.mxu0 0.0
        %661 = vmatpush2.msra.mxu0 0.0
        %662 = vmatprep.subr.mxu0 0.0
        %663 = vmatpush2.msra.mxu0 0.0
        %664 = vmatprep.subr.mxu0 0.0
        %665 = vmatpush2.msra.mxu0 0.0
        %666 = vmatprep.subr.mxu0 0.0
        %667 = vmatpush2.msra.mxu0 0.0
        %668 = vmatprep.subr.mxu0 0.0
        %669 = vmatpush2.msra.mxu0 0.0
        %670 = vmatprep.subr.mxu0 0.0
        %671 = vmatpush2.msra.mxu0 0.0
        %672 = vmatprep.mubr.f32.mxu0 0.0
        %673 = vmatmul.mubr.f32.gmra.mxu0 %v458
        %v674 = vpop.f32.mrf.mxu0
        %v675 = vadd.f32 0.0, %v674
        %v676 = vpop.f32.mrf.mxu0
        %677 = vdwg.mxu0
        %v679 = vsel %vm456, %v527, 0
        %v682 = vsel %vm456, %v601, 0
        %684 = vmatprep.subr.mxu0 0.0
        %685 = vmatpush1.xpose.msra.mxu0 0.0
        %686 = vmatprep.subr.mxu0 0.0
        %687 = vmatpush1.xpose.msra.mxu0 0.0
        %688 = vmatprep.subr.mxu0 0.0
        %689 = vmatpush1.xpose.msra.mxu0 0.0
        %690 = vmatprep.subr.mxu0 0.0
        %691 = vmatpush1.xpose.msra.mxu0 0.0
        %692 = vmatprep.subr.mxu0 0.0
        %693 = vmatpush1.xpose.msra.mxu0 0.0
        %694 = vmatprep.subr.mxu0 0.0
        %695 = vmatpush1.xpose.msra.mxu0 0.0
        %696 = vmatprep.subr.mxu0 0.0
        %697 = vmatpush1.xpose.msra.mxu0 0.0
        %698 = vmatprep.subr.mxu0 0.0
        %699 = vmatpush1.xpose.msra.mxu0 0.0
        %700 = vmatprep.subr.mxu0 0.0
        %701 = vmatpush1.xpose.msra.mxu0 0.0
        %702 = vmatprep.subr.mxu0 0.0
        %703 = vmatpush1.xpose.msra.mxu0 0.0
        %704 = vmatprep.subr.mxu0 0.0
        %705 = vmatpush1.xpose.msra.mxu0 0.0
        %706 = vmatprep.subr.mxu0 0.0
        %707 = vmatpush1.xpose.msra.mxu0 0.0
        %708 = vmatprep.subr.mxu0 0.0
        %709 = vmatpush1.xpose.msra.mxu0 0.0
        %710 = vmatprep.subr.mxu0 0.0
        %711 = vmatpush1.xpose.msra.mxu0 0.0
        %712 = vmatprep.subr.mxu0 0.0
        %713 = vmatpush1.xpose.msra.mxu0 0.0
        %714 = vmatprep.subr.mxu0 0.0
        %715 = vmatpush1.xpose.msra.mxu0 %v682
        %716 = vmatprep.subr.mxu0 0.0
        %717 = vmatpush2.xpose.msra.mxu0 0.0
        %718 = vmatprep.subr.mxu0 0.0
        %719 = vmatpush2.xpose.msra.mxu0 0.0
        %720 = vmatprep.subr.mxu0 0.0
        %721 = vmatpush2.xpose.msra.mxu0 0.0
        %722 = vmatprep.subr.mxu0 0.0
        %723 = vmatpush2.xpose.msra.mxu0 0.0
        %724 = vmatprep.subr.mxu0 0.0
        %725 = vmatpush2.xpose.msra.mxu0 0.0
        %726 = vmatprep.subr.mxu0 0.0
        %727 = vmatpush2.xpose.msra.mxu0 0.0
        %728 = vmatprep.subr.mxu0 0.0
        %729 = vmatpush2.xpose.msra.mxu0 0.0
        %730 = vmatprep.subr.mxu0 0.0
        %731 = vmatpush2.xpose.msra.mxu0 0.0
        %732 = vmatprep.subr.mxu0 0.0
        %733 = vmatpush2.xpose.msra.mxu0 0.0
        %734 = vmatprep.subr.mxu0 0.0
        %735 = vmatpush2.xpose.msra.mxu0 0.0
        %736 = vmatprep.subr.mxu0 0.0
        %737 = vmatpush2.xpose.msra.mxu0 0.0
        %738 = vmatprep.subr.mxu0 0.0
        %739 = vmatpush2.xpose.msra.mxu0 0.0
        %740 = vmatprep.subr.mxu0 0.0
        %741 = vmatpush2.xpose.msra.mxu0 0.0
        %742 = vmatprep.subr.mxu0 0.0
        %743 = vmatpush2.xpose.msra.mxu0 0.0
        %744 = vmatprep.subr.mxu0 0.0
        %745 = vmatpush2.xpose.msra.mxu0 0.0
        %746 = vmatprep.subr.mxu0 0.0
        %747 = vmatpush2.xpose.msra.mxu0 0.0
        %748 = vmatprep.mubr.f32.mxu0 0.0
        %749 = vmatmul.mubr.f32.gmra.mxu0 %v679
        %v750 = vpop.f32.mrf.mxu0
        %v751 = vadd.f32 0.0, %v750
        %v752 = vpop.f32.mrf.mxu0
        %753 = vdwg.mxu0
        %v754 = vmul.f32 %v751, 0.17677669
        %v755 = vld [vmem:[%s391] sm:$0x1]
        %vm756 = vcmp.eq.f32.partialorder %v755, 0.0
        %v757 = vsel %vm756, 1, 0
        %v758 = vlaneseq
        %v759 = vshrl.u32 %v758, 7
        %v760 = vsub.s32 0, %v759
        %v761 = vrot.slane %v757, %v760
        %vm762 = vcmp.eq.s32.totalorder %v761, 1
        %v763 = vsel %vm762, -1e+09, %v754
        %vm764 = vcmask 64512
        %v765 = vsel %vm764, %v763, -inf
        %766 = vmax.xlane.f32.xlu0 %v765
        %v767 = vpop.xlane.xlu0 %766
        %v768 = vsub.f32 %v763, %v767
        %v769 = vmul.f32 %v768, 1.442695
        %v770 = vpow.pop %v769
        %v771 = vsel %vm764, %v770, 0.0
        %772 = vadd.xlane.f32.xlu0 %v771
        %v773 = vpop.xlane.xlu0 %772
        %v774 = vrcp.pop %v773
        %v775 = vmul.f32 %v770, %v774
        %v777 = vsel %vm764, %v775, 0
        %779 = vmatprep.subr.mxu0 0.0
        %780 = vmatpush1.msra.mxu0 0.0
        %781 = vmatprep.subr.mxu0 0.0
        %782 = vmatpush1.msra.mxu0 0.0
        %783 = vmatprep.subr.mxu0 0.0
        %784 = vmatpush1.msra.mxu0 0.0
        %785 = vmatprep.subr.mxu0 0.0
        %786 = vmatpush1.msra.mxu0 0.0
        %787 = vmatprep.subr.mxu0 0.0
        %788 = vmatpush1.msra.mxu0 0.0
        %789 = vmatprep.subr.mxu0 0.0
        %790 = vmatpush1.msra.mxu0 0.0
        %791 = vmatprep.subr.mxu0 0.0
        %792 = vmatpush1.msra.mxu0 0.0
        %793 = vmatprep.subr.mxu0 0.0
        %794 = vmatpush1.msra.mxu0 0.0
        %795 = vmatprep.subr.mxu0 0.0
        %796 = vmatpush1.msra.mxu0 0.0
        %797 = vmatprep.subr.mxu0 0.0
        %798 = vmatpush1.msra.mxu0 0.0
        %799 = vmatprep.subr.mxu0 0.0
        %800 = vmatpush1.msra.mxu0 0.0
        %801 = vmatprep.subr.mxu0 0.0
        %802 = vmatpush1.msra.mxu0 0.0
        %803 = vmatprep.subr.mxu0 0.0
        %804 = vmatpush1.msra.mxu0 0.0
        %805 = vmatprep.subr.mxu0 0.0
        %806 = vmatpush1.msra.mxu0 0.0
        %807 = vmatprep.subr.mxu0 0.0
        %808 = vmatpush1.msra.mxu0 0.0
        %809 = vmatprep.subr.mxu0 0.0
        %810 = vmatpush1.msra.mxu0 %v675
        %811 = vmatprep.subr.mxu0 0.0
        %812 = vmatpush2.msra.mxu0 0.0
        %813 = vmatprep.subr.mxu0 0.0
        %814 = vmatpush2.msra.mxu0 0.0
        %815 = vmatprep.subr.mxu0 0.0
        %816 = vmatpush2.msra.mxu0 0.0
        %817 = vmatprep.subr.mxu0 0.0
        %818 = vmatpush2.msra.mxu0 0.0
        %819 = vmatprep.subr.mxu0 0.0
        %820 = vmatpush2.msra.mxu0 0.0
        %821 = vmatprep.subr.mxu0 0.0
        %822 = vmatpush2.msra.mxu0 0.0
        %823 = vmatprep.subr.mxu0 0.0
        %824 = vmatpush2.msra.mxu0 0.0
        %825 = vmatprep.subr.mxu0 0.0
        %826 = vmatpush2.msra.mxu0 0.0
        %827 = vmatprep.subr.mxu0 0.0
        %828 = vmatpush2.msra.mxu0 0.0
        %829 = vmatprep.subr.mxu0 0.0
        %830 = vmatpush2.msra.mxu0 0.0
        %831 = vmatprep.subr.mxu0 0.0
        %832 = vmatpush2.msra.mxu0 0.0
        %833 = vmatprep.subr.mxu0 0.0
        %834 = vmatpush2.msra.mxu0 0.0
        %835 = vmatprep.subr.mxu0 0.0
        %836 = vmatpush2.msra.mxu0 0.0
        %837 = vmatprep.subr.mxu0 0.0
        %838 = vmatpush2.msra.mxu0 0.0
        %839 = vmatprep.subr.mxu0 0.0
        %840 = vmatpush2.msra.mxu0 0.0
        %841 = vmatprep.subr.mxu0 0.0
        %842 = vmatpush2.msra.mxu0 0.0
        %843 = vmatprep.mubr.f32.mxu0 0.0
        %844 = vmatmul.mubr.f32.gmra.mxu0 %v777
        %v845 = vpop.f32.mrf.mxu0
        %v846 = vadd.f32 0.0, %v845
        %v847 = vpop.f32.mrf.mxu0
        %848 = vdwg.mxu0
        %v849 = vld [vmem:[#allocation11] sm:$0xff]
        %v850 = vld [vmem:[#allocation11 + $0x8] sm:$0xff]
        %v851 = vld [vmem:[#allocation11 + $0x10] sm:$0xff]
        %v852 = vld [vmem:[#allocation11 + $0x18] sm:$0xff]
        %v854 = vsel %vm456, %v846, 0
        %856 = vmatprep.subr.mxu0 0.0
        %857 = vmatpush1.msra.mxu0 0.0
        %858 = vmatprep.subr.mxu0 0.0
        %859 = vmatpush1.msra.mxu0 0.0
        %860 = vmatprep.subr.mxu0 0.0
        %861 = vmatpush1.msra.mxu0 0.0
        %862 = vmatprep.subr.mxu0 0.0
        %863 = vmatpush1.msra.mxu0 0.0
        %864 = vmatprep.subr.mxu0 0.0
        %865 = vmatpush1.msra.mxu0 0.0
        %866 = vmatprep.subr.mxu0 0.0
        %867 = vmatpush1.msra.mxu0 0.0
        %868 = vmatprep.subr.mxu0 0.0
        %869 = vmatpush1.msra.mxu0 0.0
        %870 = vmatprep.subr.mxu0 0.0
        %871 = vmatpush1.msra.mxu0 0.0
        %872 = vmatprep.subr.mxu0 0.0
        %873 = vmatpush1.msra.mxu0 0.0
        %874 = vmatprep.subr.mxu0 0.0
        %875 = vmatpush1.msra.mxu0 0.0
        %876 = vmatprep.subr.mxu0 0.0
        %877 = vmatpush1.msra.mxu0 0.0
        %878 = vmatprep.subr.mxu0 0.0
        %879 = vmatpush1.msra.mxu0 0.0
        %880 = vmatprep.subr.mxu0 0.0
        %881 = vmatpush1.msra.mxu0 %v852
        %882 = vmatprep.subr.mxu0 0.0
        %883 = vmatpush1.msra.mxu0 %v851
        %884 = vmatprep.subr.mxu0 0.0
        %885 = vmatpush1.msra.mxu0 %v850
        %886 = vmatprep.subr.mxu0 0.0
        %887 = vmatpush1.msra.mxu0 %v849
        %888 = vmatprep.subr.mxu0 0.0
        %889 = vmatpush2.msra.mxu0 0.0
        %890 = vmatprep.subr.mxu0 0.0
        %891 = vmatpush2.msra.mxu0 0.0
        %892 = vmatprep.subr.mxu0 0.0
        %893 = vmatpush2.msra.mxu0 0.0
        %894 = vmatprep.subr.mxu0 0.0
        %895 = vmatpush2.msra.mxu0 0.0
        %896 = vmatprep.subr.mxu0 0.0
        %897 = vmatpush2.msra.mxu0 0.0
        %898 = vmatprep.subr.mxu0 0.0
        %899 = vmatpush2.msra.mxu0 0.0
        %900 = vmatprep.subr.mxu0 0.0
        %901 = vmatpush2.msra.mxu0 0.0
        %902 = vmatprep.subr.mxu0 0.0
        %903 = vmatpush2.msra.mxu0 0.0
        %904 = vmatprep.subr.mxu0 0.0
        %905 = vmatpush2.msra.mxu0 0.0
        %906 = vmatprep.subr.mxu0 0.0
        %907 = vmatpush2.msra.mxu0 0.0
        %908 = vmatprep.subr.mxu0 0.0
        %909 = vmatpush2.msra.mxu0 0.0
        %910 = vmatprep.subr.mxu0 0.0
        %911 = vmatpush2.msra.mxu0 0.0
        %912 = vmatprep.subr.mxu0 0.0
        %913 = vmatpush2.msra.mxu0 0.0
        %914 = vmatprep.subr.mxu0 0.0
        %915 = vmatpush2.msra.mxu0 0.0
        %916 = vmatprep.subr.mxu0 0.0
        %917 = vmatpush2.msra.mxu0 0.0
        %918 = vmatprep.subr.mxu0 0.0
        %919 = vmatpush2.msra.mxu0 0.0
        %920 = vmatprep.mubr.f32.mxu0 0.0
        %921 = vmatmul.mubr.f32.gmra.mxu0 %v854
        %v922 = vpop.f32.mrf.mxu0
        %v923 = vadd.f32 %v451, %v922
        %v924 = vpop.f32.mrf.mxu0
        %925 = vdwg.mxu0
        %v926 = vsel %vm456, %v923, 0.0
        %927 = vadd.xlane.f32.xlu0 %v926
        %v928 = vpop.xlane.xlu0 %927
        %v929 = vrcp.pop 32.0
        %v930 = vmul.f32 %v928, %v929
        %v931 = vsub.f32 %v923, %v930
        %v932 = vmul.f32 %v931, %v931
        %v933 = vsel %vm456, %v932, 0.0
        %934 = vadd.xlane.f32.xlu0 %v933
        %v935 = vpop.xlane.xlu0 %934
        %v936 = vmul.f32 %v935, %v929
        %v937 = vadd.f32 %v936, 1e-06
        %v938 = vrsqrt.pop %v937
        %v939 = vmul.f32 %v931, %v938
        %v940 = vld [vmem:[%s6] sm:$0x1]
        %v942 = vlaneseq
        %v943 = vshrl.u32 %v942, 7
        %v944 = vsub.s32 0, %v943
        %v945 = vrot.slane %v940, %v944
        %v947 = vmul.f32 %v939, %v945
        %v948 = vld [vmem:[%s7] sm:$0x1]
        %v950 = vlaneseq
        %v951 = vshrl.u32 %v950, 7
        %v952 = vsub.s32 0, %v951
        %v953 = vrot.slane %v948, %v952
        %v955 = vadd.f32 %v947, %v953
        %956 = vst.msk [vmem:[%s443] sm:$0xff] %vm456, %v955
        %957 = vst.msk [vmem:[%s450] sm:$0xff] %vm764, %v775
        %s958 = sand.u32 %s221, 1
        %s959 = scalar_lea.sflag [#allocation4], %s958
        %s960 = sand.u32 %s221, 1
        %s961 = smul.addr %s960, 8
        %s962 = scalar_lea.vmem [#allocation13], %s961
        %s963 = sand.u32 %s247, 1
        %s964 = scalar_lea.sflag [#allocation15], %s963
        %s965 = sand.u32 %s247, 1
        %s966 = smul.addr %s965, 8
        %s967 = scalar_lea.vmem [#allocation14], %s966
        // Predicated region
        $region77: #{tpu_custom_call.1} parent=51 // pred_check
          %p968 = pneg %p231
        $region78: #{tpu_custom_call.1} parent=51 // pred_check_branch
          %970 = sbr.rel (%p968) target = $region80
        $region79: #{tpu_custom_call.1} parent=51 // pred_region
          %s972 = ssub.s32 128, 128
          %973 = vsyncadd %s959, %s972
          %s974 = smul.addr %s35, 128
          %s975 = scalar_lea.hbm %s8, %s974
          %s977 = sshll.u32 %s962, 4
          %s978 = int_to_ptr.vmem [resolvable:$true] %s977
          %980 = dma.vmem_to_hbm [thread:$0]  %s978, 128, %s975, %s959
        $region80: #{tpu_custom_call.1} parent=51 // pred_fallthru
          _
        // Predicated region
        $region81: #{tpu_custom_call.1} parent=51 // pred_check
          %p981 = pneg %p257
        $region82: #{tpu_custom_call.1} parent=51 // pred_check_branch
          %983 = sbr.rel (%p981) target = $region84
        $region83: #{tpu_custom_call.1} parent=51 // pred_region
          %s985 = ssub.s32 128, 128
          %986 = vsyncadd %s964, %s985
          %s987 = smul.addr %s35, 128
          %s988 = scalar_lea.hbm %s9, %s987
          %s990 = sshll.u32 %s967, 4
          %s991 = int_to_ptr.vmem [resolvable:$true] %s990
          %993 = dma.vmem_to_hbm [thread:$0]  %s991, 128, %s988, %s964
        $region84: #{tpu_custom_call.1} parent=51 // pred_fallthru
          _
      $region52: #{tpu_custom_call.1} parent=5 // pred_fallthru
        _
      %p994 = scmp.le.s32.totalorder 2, %s30
      // Predicated region
      $region85: #{tpu_custom_call.1} parent=5 // pred_check
        %p995 = pneg %p994
      $region86: #{tpu_custom_call.1} parent=5 // pred_check_branch
        %997 = sbr.rel (%p995) target = $region88
      $region87: #{tpu_custom_call.1} parent=5 // pred_region
        %s998 = ssub.s32 %s30, 2
        // Predicated region
        $region89: #{tpu_custom_call.1} parent=87 // pred_check
          %p999 = pneg %p237
        $region90: #{tpu_custom_call.1} parent=87 // pred_check_branch
          %1001 = sbr.rel (%p999) target = $region92
        $region91: #{tpu_custom_call.1} parent=87 // pred_region
          %s1002 = sand.u32 %s222, 1
          %s1003 = scalar_lea.sflag [#allocation4], %s1002
          %s1004 = sand.u32 %s222, 1
          %s1005 = smul.addr %s1004, 8
          %s1006 = scalar_lea.vmem [#allocation13], %s1005
          %1007 = dma.done %s1003, 128
        $region92: #{tpu_custom_call.1} parent=87 // pred_fallthru
          _
        // Predicated region
        $region93: #{tpu_custom_call.1} parent=87 // pred_check
          %p1008 = pneg %p263
        $region94: #{tpu_custom_call.1} parent=87 // pred_check_branch
          %1010 = sbr.rel (%p1008) target = $region96
        $region95: #{tpu_custom_call.1} parent=87 // pred_region
          %s1011 = sand.u32 %s248, 1
          %s1012 = scalar_lea.sflag [#allocation15], %s1011
          %s1013 = sand.u32 %s248, 1
          %s1014 = smul.addr %s1013, 8
          %s1015 = scalar_lea.vmem [#allocation14], %s1014
          %1016 = dma.done %s1012, 128
        $region96: #{tpu_custom_call.1} parent=87 // pred_fallthru
          _
      $region88: #{tpu_custom_call.1} parent=5 // pred_fallthru
        _
    $region6: #{tpu_custom_call.1} parent=1 // loop_footer
      %s34 = sadd.s32 1, %s30
    $region7: #{tpu_custom_call.1} parent=1 // loop_footer_branch
      %29 = sbr.rel target = $region3
    $region8: #{tpu_custom_call.1} parent=1 // loop_exit
      _
    %1017 = vsyncpa [#allocation3], 1
    %s1018 = scalar_lea.sflag [#allocation3], 1
    %1019 = vsyncpa %s1018, 1
    %1020 = vsyncpa [#allocation6], 1
    %s1021 = scalar_lea.sflag [#allocation6], 1
    %1022 = vsyncpa %s1021, 1
    %1023 = vsyncpa [#allocation9], 1
    %1024 = vsyncpa [#allocation12], 1
    %1025 = vsyncpa [#allocation4], 1
    %s1026 = scalar_lea.sflag [#allocation4], 1
    %1027 = vsyncpa %s1026, 1
    %1028 = vsyncpa [#allocation15], 1
    %s1029 = scalar_lea.sflag [#allocation15], 1
    %1030 = vsyncpa %s1029, 1

</llo_original>
